<compile_context>
chip_gen: v7x
topology: tpu7x:2x2x1
jax: 0.10.0
libtpu: 0.0.40
codegen_flags: <defaults>
</compile_context>

<pallas_src>
import math

import jax
import jax.numpy as jnp
from jax.experimental import pallas as pl
from jax.experimental.pallas import tpu as pltpu


def get_pos_enc_matrix_2(channels: int, length: int,
                         min_timescale: float = 1.0,
                         max_timescale: float = 10000.0) -> jnp.ndarray:
    """JAX port of PositionalEncoding.get_pos_enc_matrix_2 -> (channels, length) f32."""
    position = jnp.arange(length, dtype=jnp.float32)
    num_timescales = channels // 2
    # Guard (num_timescales - 1) == 0 (channels == 2): the increment multiplies
    # arange(1) == [0], so its value is irrelevant; PyTorch ref would div-by-zero.
    if num_timescales > 1:
        log_timescale_increment = (
            math.log(float(max_timescale) / float(min_timescale))
            / (float(num_timescales) - 1))
    else:
        log_timescale_increment = 1.0
    inv_timescales = min_timescale * jnp.exp(
        jnp.arange(num_timescales, dtype=jnp.float32) * -log_timescale_increment)
    scaled_time = position[:, None] * inv_timescales[None, :]        # (L, C//2)
    signal = jnp.concatenate(
        [jnp.sin(scaled_time), jnp.cos(scaled_time)], axis=1)        # (L, 2*(C//2))
    pad = channels % 2
    if pad:
        signal = jnp.pad(signal, ((0, 0), (0, pad)))                 # right-pad zeros
    return signal.T                                                   # (C, L)


def _add_pe_kernel(x_ref, pe_ref, o_ref):
    # x_ref: (Bt, Nt); pe_ref: (1, Nt) f32; broadcast add over the row axis.
    # Compute in f32 (exact for f32 inputs; faithful to the PyTorch f32 table
    # for low-precision inputs), then cast to the output dtype.
    o_ref[...] = (x_ref[...].astype(jnp.float32) + pe_ref[...]).astype(o_ref.dtype)


_LANE_TILE_CAP = 32 * 1024       # elems per lane tile (128 KiB f32 per row)
_TARGET_BLOCK_BYTES = 4 << 20    # ~4 MiB x-block -> step overhead < ~10% on v7x
_BYPASS_BYTES = 1 << 20          # below this, plain XLA add is already at roofline


def _cdiv(a: int, b: int) -> int:
    return -(-a // b)


def _round_up(v: int, m: int) -> int:
    return _cdiv(v, m) * m


def _round_down(v: int, m: int) -> int:
    return (v // m) * m


def positional_encoding_forward(x: jnp.ndarray, pos_encoding: jnp.ndarray, *,
                                min_kernel_bytes: int = _BYPASS_BYTES) -> jnp.ndarray:
    """x: [B, C, L]; pos_encoding: [C_max, L_max] with C_max >= C, L_max >= L."""
    B, C, L = x.shape
    pe = pos_encoding[:C, :L]                              # (C, L) f32 table slice

    itemsize = jnp.dtype(x.dtype).itemsize
    if B * C * L * itemsize < min_kernel_bytes:
        # Small-problem bypass: kernel launch + pipeline prologue dwarf the add.
        return (x.astype(jnp.float32) + pe[None, :, :]).astype(x.dtype)

    N = C * L
    x2 = x.reshape(B, N)                                   # lane-dense flattened view
    pe2 = pe.reshape(1, N).astype(jnp.float32)

    # --- lane (last-dim) tile: multiple of 128, <= cap; ragged tail is masked ---
    if N < 128:
        Nt = N                                             # full dim (always legal)
    else:
        Nt = min(_LANE_TILE_CAP, _round_down(N, 128))

    # --- row (batch) tile: multiple of 8 (or full B), sized for ~4 MiB blocks ---
    target_rows = max(1, _TARGET_BLOCK_BYTES // max(1, Nt * itemsize))
    if B < 8:
        Bt = B                                             # full dim (always legal)
    else:
        Bt = max(8, min(_round_down(B, 8), _round_up(target_rows, 8)))

    # --- give v7x's two TensorCores >= 2 blocks whenever the shape allows it ---
    if _cdiv(N, Nt) * _cdiv(B, Bt) < 2:
        if N >= 256:
            Nt = _round_up(_cdiv(N, 2), 128)               # still multiple of 128, <= N
        elif B >= 16:
            Bt = _round_up(_cdiv(B, 2), 8)                 # still multiple of 8, <= B

    # Batch is the INNER grid axis so the pe tile's block index (0, j) is constant
    # across consecutive steps and Pallas skips its redundant HBM re-fetch.
    grid = (_cdiv(N, Nt), _cdiv(B, Bt))

    # --- generation-aware VMEM request: what the pipeline needs, not the chip ---
    try:
        vmem_cap = int(pltpu.get_tpu_info().vmem_capacity_bytes)
    except Exception:
        vmem_cap = 64 << 20                                # conservative (v7x per-TC)
    block_bytes = Bt * Nt * itemsize
    pe_bytes = Nt * 4
    pipelined = 4 * block_bytes + 2 * pe_bytes             # dbl-buffered x + out, pe
    vmem_limit = max(16 << 20, min(pipelined + (4 << 20), (vmem_cap * 3) // 4))

    out2 = pl.pallas_call(
        _add_pe_kernel,
        out_shape=jax.ShapeDtypeStruct((B, N), x.dtype),
        grid_spec=pltpu.PrefetchScalarGridSpec(
            num_scalar_prefetch=0,
            grid=grid,
            in_specs=[
                pl.BlockSpec((Bt, Nt), lambda j, i: (i, j)),   # x tile
                pl.BlockSpec((1, Nt), lambda j, i: (0, j)),    # pe tile (reused over i)
            ],
            out_specs=pl.BlockSpec((Bt, Nt), lambda j, i: (i, j)),
        ),
        input_output_aliases={0: 0},                       # out aliases x (pure x += pe)
        compiler_params=pltpu.CompilerParams(
            dimension_semantics=("parallel", "parallel"),
            vmem_limit_bytes=int(vmem_limit),
        ),
    )(x2, pe2)
    return out2.reshape(B, C, L)


if __name__ == "__main__":
    # Module config: dim (channels) and max_len of the stored table.
    dim = 32
    max_len = 64

    # Deterministic non-trainable parameter (sinusoid table), shape (32, 64) f32.
    pos_encoding = get_pos_enc_matrix_2(dim, max_len)

    # Example input: batch=2, channels=dim=32, length=16 (<= max_len).
    key = jax.random.PRNGKey(0)
    x = jax.random.normal(key, (2, dim, 16), dtype=jnp.float32)

    # Force the Pallas path for this tiny example (the wrapper's small-problem
    # bypass would otherwise handle it with a plain XLA add).
    out = positional_encoding_forward(x, pos_encoding, min_kernel_bytes=0)
    out = jax.block_until_ready(out)

    # Cross-check against plain-JAX reference of the forward pass.
    ref = x + pos_encoding[: x.shape[-2], : x.shape[-1]]
    assert out.shape == x.shape
    assert jnp.allclose(out, ref, atol=1e-6, rtol=1e-6)

    print("KERNEL_OK")
</pallas_src>

<mosaic_0001>
module attributes {stable_mosaic.version = 11 : i64} {
  func.func @_add_pe_kernel(%arg0: i32, %arg1: i32, %arg2: memref<2x256xf32, #tpu.memory_space<vmem>>, %arg3: memref<1x256xf32, #tpu.memory_space<vmem>>, %arg4: memref<2x256xf32, #tpu.memory_space<vmem>>) attributes {dimension_semantics = [#tpu.dimension_semantics<parallel>, #tpu.dimension_semantics<parallel>], iteration_bounds = array<i64: 2, 1>, scalar_prefetch = 0 : i64, scratch_operands = 0 : i64, tpu.core_type = #tpu.core_type<tc>, window_params = [{transform_indices = @transform_0, window_bounds = array<i64: 2, 256>}, {transform_indices = @transform_1, window_bounds = array<i64: 1, 256>}, {transform_indices = @transform_2, window_bounds = array<i64: 2, 256>}]} {
    %c0 = arith.constant 0 : index
    %c0_0 = arith.constant 0 : index
    %0 = vector.load %arg2[%c0, %c0_0] : memref<2x256xf32, #tpu.memory_space<vmem>>, vector<2x256xf32>
    %c0_1 = arith.constant 0 : index
    %c0_2 = arith.constant 0 : index
    %1 = vector.load %arg3[%c0_1, %c0_2] : memref<1x256xf32, #tpu.memory_space<vmem>>, vector<1x256xf32>
    %2 = vector.broadcast %1 : vector<1x256xf32> to vector<2x256xf32>
    %3 = arith.addf %0, %2 : vector<2x256xf32>
    %c0_3 = arith.constant 0 : index
    %c0_4 = arith.constant 0 : index
    %4 = vector.load %arg4[%c0_3, %c0_4] : memref<2x256xf32, #tpu.memory_space<vmem>>, vector<2x256xf32>
    tpu.vector_store %arg4[%c0_3, %c0_4], %3 {strides = array<i32>} : memref<2x256xf32, #tpu.memory_space<vmem>>, vector<2x256xf32>,
    return
  }
  func.func @transform_0(%arg0: i32, %arg1: i32) -> (i32, i32) {
    %c0_i32 = arith.constant 0 : i32
    return %arg1, %arg0 : i32, i32
  }
  func.func @transform_1(%arg0: i32, %arg1: i32) -> (i32, i32) {
    %c0_i32 = arith.constant 0 : i32
    %c0_i32_0 = arith.constant 0 : i32
    return %c0_i32, %arg0 : i32, i32
  }
  func.func @transform_2(%arg0: i32, %arg1: i32) -> (i32, i32) {
    %c0_i32 = arith.constant 0 : i32
    return %arg1, %arg0 : i32, i32
  }
}

</mosaic_0001>

<llo_original>
// kernel: tpu_custom_call.1
$region0: #{tpu_custom_call.1}
  #allocation0 [shape = 'u32[]', space=smem, size = 0x4, offset = 0x4, fixed_abs, tag = 'smem constant byte address 0x4 - core index']
  #allocation1 [shape = 'u32[144,128]{1,0:T(1,128)}', space=vmem, size = 0x12000, scoped, tag = 'internal scratch']
  %s0 = inlined_call_operand.hbm [shape: f32[2,512], index: 0, kind: input, shape index: {}, may-alias: {0,2}]
  %s1 = inlined_call_operand.vmem [shape: f32[1,512], index: 1, kind: input, shape index: {}]
  %s2 = inlined_call_operand.hbm [shape: f32[2,512], index: 2, kind: output, shape index: {}, may-alias: {0,2}]
  %s3 = sld [smem:[#allocation0]]
  $region45: #{tpu_custom_call.1} parent=0
    _
  %s5 = ssub.s32 1, %s3
  %s6 = scalar_select 0, %s5, %s3
  $region1: #{tpu_custom_call.1} parent=0
    #allocation2 [shape = 'u8[4096]{0}', space=vmem, size = 0x1000, scoped, tag = 'input window, operand 0']
    #allocation3 [shape = 's32[2]{0}', space=sflag, size = 0x8, scoped, tag = 'scoped memory for tpu_custom_call.1']
    #allocation4 [shape = 's32[2]{0}', space=sflag, size = 0x8, scoped, tag = 'scoped memory for tpu_custom_call.1']
    #allocation5 [shape = 'u8[4096]{0}', space=vmem, size = 0x1000, scoped, tag = 'output window, operand 0']
    %7 = vsyncpa [#allocation3], 0
    %s8 = scalar_lea.sflag [#allocation3], 1
    %9 = vsyncpa %s8, 0
    %10 = vsyncpa [#allocation4], 0
    %s11 = scalar_lea.sflag [#allocation4], 1
    %12 = vsyncpa %s11, 0
    loop: start=0, step=1, limit=4
    $region2: #{tpu_custom_call.1} parent=1 // loop_pre_header
      _
    $region3: #{tpu_custom_call.1} parent=1 // loop_header
      %s14 = sphi 0, %s18
      %p15 = scmp.ge.s32.totalorder %s14, 4
      %s21 = sphi 0, %s33
      %s22 = sphi 0, %s29
      %s23 = sphi 0, %s21
      %s24 = sphi 0, %s22
      %s25 = sphi 0, %s23
      %s26 = sphi 0, %s24
      %s38 = sphi 0, %s40
      %s41 = sphi 0, %s38
      %s42 = sphi 0, %s41
      %s58 = sphi 0, %s42
      %s64 = sphi 0, %s66
      %s67 = sphi 0, %s64
      %s68 = sphi 0, %s67
      %s84 = sphi 0, %s68
      %s92 = sphi 0, %s94
      %s95 = sphi 0, %s92
      %s96 = sphi 0, %s95
      %s112 = sphi 0, %s96
    $region4: #{tpu_custom_call.1} parent=1 // loop_header_branch
      %17 = sbr.rel (%p15) target = $region8
    $region5: #{tpu_custom_call.1} parent=1 // loop_body
      %s19 = ssub.s32 %s14, 1
      %s20 = ssub.s32 %s14, 2
      %s27 = sadd.s32 1, %s22
      %p28 = scmp.ge.s32.totalorder %s27, 1
      %s29 = scalar_select %p28, 0, %s27
      %s30 = sadd.s32 1, %s21
      %s31 = scalar_select %p28, %s30, %s21
      %p32 = scmp.ge.s32.totalorder %s31, 2
      %s33 = scalar_select %p32, 0, %s31
      %s34 = ssub.s32 %s22, %s29
      %s35 = ssub.s32 %s21, %s33
      %s36 = sor.u32 %s34, %s35
      %p37 = scmp.eq.s32.totalorder %s36, 0
      %s39 = sadd.s32 %s38, 1
      %s40 = scalar_select %p37, %s38, %s39
      %p43 = pneg %p37
      %p44 = scmp.eq.s32.totalorder %s14, 1
      %p45 = por %p43, %p44
      %p46 = scmp.ne.s32.totalorder %s38, %s41
      %p47 = scmp.eq.s32.totalorder %s14, 0
      %p48 = por %p46, %p47
      %p49 = scmp.ne.s32.totalorder %s38, %s41
      %p50 = scmp.eq.s32.totalorder %s19, 1
      %p51 = por %p49, %p50
      %p52 = scmp.ne.s32.totalorder %s41, %s42
      %p53 = scmp.eq.s32.totalorder %s19, 0
      %p54 = por %p52, %p53
      %p55 = scmp.ne.s32.totalorder %s41, %s42
      %p56 = scmp.eq.s32.totalorder %s20, 1
      %p57 = por %p55, %p56
      %p59 = scmp.ne.s32.totalorder %s42, %s58
      %p60 = scmp.eq.s32.totalorder %s20, 0
      %p61 = por %p59, %p60
      %s62 = ssub.s32 %s21, %s33
      %p63 = scmp.eq.s32.totalorder %s62, 0
      %s65 = sadd.s32 %s64, 1
      %s66 = scalar_select %p63, %s64, %s65
      %p69 = pneg %p63
      %p70 = scmp.eq.s32.totalorder %s14, 1
      %p71 = por %p69, %p70
      %p72 = scmp.ne.s32.totalorder %s64, %s67
      %p73 = scmp.eq.s32.totalorder %s14, 0
      %p74 = por %p72, %p73
      %p75 = scmp.ne.s32.totalorder %s64, %s67
      %p76 = scmp.eq.s32.totalorder %s19, 1
      %p77 = por %p75, %p76
      %p78 = scmp.ne.s32.totalorder %s67, %s68
      %p79 = scmp.eq.s32.totalorder %s19, 0
      %p80 = por %p78, %p79
      %p81 = scmp.ne.s32.totalorder %s67, %s68
      %p82 = scmp.eq.s32.totalorder %s20, 1
      %p83 = por %p81, %p82
      %p85 = scmp.ne.s32.totalorder %s68, %s84
      %p86 = scmp.eq.s32.totalorder %s20, 0
      %p87 = por %p85, %p86
      %s88 = ssub.s32 %s22, %s29
      %s89 = ssub.s32 %s21, %s33
      %s90 = sor.u32 %s88, %s89
      %p91 = scmp.eq.s32.totalorder %s90, 0
      %s93 = sadd.s32 %s92, 1
      %s94 = scalar_select %p91, %s92, %s93
      %p97 = pneg %p91
      %p98 = scmp.eq.s32.totalorder %s14, 1
      %p99 = por %p97, %p98
      %p100 = scmp.ne.s32.totalorder %s92, %s95
      %p101 = scmp.eq.s32.totalorder %s14, 0
      %p102 = por %p100, %p101
      %p103 = scmp.ne.s32.totalorder %s92, %s95
      %p104 = scmp.eq.s32.totalorder %s19, 1
      %p105 = por %p103, %p104
      %p106 = scmp.ne.s32.totalorder %s95, %s96
      %p107 = scmp.eq.s32.totalorder %s19, 0
      %p108 = por %p106, %p107
      %p109 = scmp.ne.s32.totalorder %s95, %s96
      %p110 = scmp.eq.s32.totalorder %s20, 1
      %p111 = por %p109, %p110
      %p113 = scmp.ne.s32.totalorder %s96, %s112
      %p114 = scmp.eq.s32.totalorder %s20, 0
      %p115 = por %p113, %p114
      %p116 = scmp.le.s32.totalorder 1, %s14
      %p117 = scmp.lt.s32.totalorder %s14, 3
      %p118 = pnand %p116, %p117
      %p119 = pneg %p118
      // Predicated region
      $region9: #{tpu_custom_call.1} parent=5 // pred_check
        _
      $region10: #{tpu_custom_call.1} parent=5 // pred_check_branch
        %121 = sbr.rel (%p118) target = $region12
      $region11: #{tpu_custom_call.1} parent=5 // pred_region
        %s122 = ssub.s32 %s14, 1
      $region12: #{tpu_custom_call.1} parent=5 // pred_fallthru
        _
      %p123 = scmp.lt.s32.totalorder %s14, 2
      // Predicated region
      $region13: #{tpu_custom_call.1} parent=5 // pred_check
        %p124 = pneg %p123
      $region14: #{tpu_custom_call.1} parent=5 // pred_check_branch
        %126 = sbr.rel (%p124) target = $region16
      $region15: #{tpu_custom_call.1} parent=5 // pred_region
        // Predicated region
        $region17: #{tpu_custom_call.1} parent=15 // pred_check
          %p127 = pneg %p48
        $region18: #{tpu_custom_call.1} parent=15 // pred_check_branch
          %129 = sbr.rel (%p127) target = $region20
        $region19: #{tpu_custom_call.1} parent=15 // pred_region
          %s130 = sand.u32 %s38, 1
          %s131 = scalar_lea.sflag [#allocation3], %s130
          %s132 = sand.u32 %s38, 1
          %s133 = smul.addr %s132, 4
          %s134 = scalar_lea.vmem [#allocation2], %s133
          %s135 = smul.u32 2, %s21
          %s137 = ssub.s32 64, 64
          %138 = vsyncadd %s131, %s137
          %s139 = smul.addr %s22, 4
          %s140 = sadd.s32 %s135, %s139
          %s141 = smul.addr %s140, 32
          %s142 = scalar_lea.hbm %s0, %s141
          %s144 = sshll.u32 %s134, 4
          %s145 = int_to_ptr.vmem [resolvable:$true] %s144
          %147 = dma.hbm_to_vmem [thread:$0]  %s142, 64, %s145, %s131
        $region20: #{tpu_custom_call.1} parent=15 // pred_fallthru
          _
        // Predicated region
        $region21: #{tpu_custom_call.1} parent=15 // pred_check
          %p148 = pneg %p74
        $region22: #{tpu_custom_call.1} parent=15 // pred_check_branch
          %150 = sbr.rel (%p148) target = $region24
        $region23: #{tpu_custom_call.1} parent=15 // pred_region
          %s151 = smul.u32 2, %s21
          %p152 = scmp.lt.s32.totalorder %s151, 3
          %s153 = scalar_select %p152, %s151, 3
          %s154 = scalar_lea.vmem %s1, %s153
          %s155 = smul.u32 2, %s21
        $region24: #{tpu_custom_call.1} parent=15 // pred_fallthru
          _
      $region16: #{tpu_custom_call.1} parent=5 // pred_fallthru
        _
      %p156 = scmp.le.s32.totalorder 1, %s14
      %p157 = scmp.lt.s32.totalorder %s14, 3
      %p158 = pnand %p156, %p157
      %p159 = pneg %p158
      // Predicated region
      $region25: #{tpu_custom_call.1} parent=5 // pred_check
        _
      $region26: #{tpu_custom_call.1} parent=5 // pred_check_branch
        %161 = sbr.rel (%p158) target = $region28
      $region27: #{tpu_custom_call.1} parent=5 // pred_region
        %s162 = ssub.s32 %s14, 1
        %s163 = sand.u32 %s41, 1
        %s164 = scalar_lea.sflag [#allocation3], %s163
        %s165 = sand.u32 %s41, 1
        %s166 = smul.addr %s165, 4
        %s167 = scalar_lea.vmem [#allocation2], %s166
        // Predicated region
        $region29: #{tpu_custom_call.1} parent=27 // pred_check
          %p168 = pneg %p54
        $region30: #{tpu_custom_call.1} parent=27 // pred_check_branch
          %170 = sbr.rel (%p168) target = $region32
        $region31: #{tpu_custom_call.1} parent=27 // pred_region
          %171 = dma.done %s164, 64
        $region32: #{tpu_custom_call.1} parent=27 // pred_fallthru
          _
        %s172 = sand.u32 %s41, 1
        %s173 = scalar_lea.sflag [#allocation3], %s172
        %s174 = sand.u32 %s41, 1
        %s175 = smul.addr %s174, 4
        %s176 = scalar_lea.vmem [#allocation2], %s175
        %p177 = pneg %p54
        %p178 = pneg %p51
        %s179 = smul.u32 2, %s23
        %p180 = scmp.lt.s32.totalorder %s179, 3
        %s181 = scalar_select %p180, %s179, 3
        %s182 = scalar_lea.vmem %s1, %s181
        %p183 = pneg %p80
        %p184 = pneg %p77
        %p185 = pneg %p108
        %p186 = pneg %p105
        %s187 = sand.u32 %s95, 1
        %s188 = scalar_lea.sflag [#allocation4], %s187
        %s189 = sand.u32 %s95, 1
        %s190 = smul.addr %s189, 4
        %s191 = scalar_lea.vmem [#allocation5], %s190
        %s192 = smul.u32 2, %s23
        %s193 = smul.u32 2, %s23
        %p194 = scmp.lt.s32.totalorder %s193, 3
        %s195 = scalar_select %p194, %s193, 3
        %s196 = scalar_lea.vmem %s1, %s195
        %s197 = smul.u32 2, %s23
        %s198 = smul.u32 2, %s23
        %v199 = vld [vmem:[%s167] sm:$0xf]
        %v200 = vld [vmem:[%s196] sm:$0x3]
        %v202 = vlaneseq
        %v203 = vshrl.u32 %v202, 7
        %v204 = vsub.s32 0, %v203
        %v205 = vrot.slane %v200, %v204
        %v206 = vlaneseq
        %v207 = vshrl.u32 %v206, 7
        %v208 = vsub.s32 1, %v207
        %v209 = vrot.slane %v200, %v208
        %v210 = vcombine.low %v205, %v209
        %v212 = vunpack.c.l.s4 1983009808
        %v213 = vunpack.c.0.s8 %v212
        %v214 = vlaneseq
        %v215 = vshrl.u32 %v214, 7
        %v216 = vsub.s32 %v213, %v215
        %v217 = vrot.slane %v210, %v216
        %v219 = vadd.f32 %v199, %v217
        %220 = vst [vmem:[%s191] sm:$0xf] %v219
        %s221 = sand.u32 %s95, 1
        %s222 = scalar_lea.sflag [#allocation4], %s221
        %s223 = sand.u32 %s95, 1
        %s224 = smul.addr %s223, 4
        %s225 = scalar_lea.vmem [#allocation5], %s224
        // Predicated region
        $region33: #{tpu_custom_call.1} parent=27 // pred_check
          %p226 = pneg %p105
        $region34: #{tpu_custom_call.1} parent=27 // pred_check_branch
          %228 = sbr.rel (%p226) target = $region36
        $region35: #{tpu_custom_call.1} parent=27 // pred_region
          %s229 = smul.u32 2, %s23
          %s231 = ssub.s32 64, 64
          %232 = vsyncadd %s222, %s231
          %s233 = smul.addr %s24, 4
          %s234 = sadd.s32 %s229, %s233
          %s235 = smul.addr %s234, 32
          %s236 = scalar_lea.hbm %s2, %s235
          %s238 = sshll.u32 %s225, 4
          %s239 = int_to_ptr.vmem [resolvable:$true] %s238
          %241 = dma.vmem_to_hbm [thread:$0]  %s239, 64, %s236, %s222
        $region36: #{tpu_custom_call.1} parent=27 // pred_fallthru
          _
      $region28: #{tpu_custom_call.1} parent=5 // pred_fallthru
        _
      %p242 = scmp.le.s32.totalorder 2, %s14
      // Predicated region
      $region37: #{tpu_custom_call.1} parent=5 // pred_check
        %p243 = pneg %p242
      $region38: #{tpu_custom_call.1} parent=5 // pred_check_branch
        %245 = sbr.rel (%p243) target = $region40
      $region39: #{tpu_custom_call.1} parent=5 // pred_region
        %s246 = ssub.s32 %s14, 2
        // Predicated region
        $region41: #{tpu_custom_call.1} parent=39 // pred_check
          %p247 = pneg %p111
        $region42: #{tpu_custom_call.1} parent=39 // pred_check_branch
          %249 = sbr.rel (%p247) target = $region44
        $region43: #{tpu_custom_call.1} parent=39 // pred_region
          %s250 = sand.u32 %s96, 1
          %s251 = scalar_lea.sflag [#allocation4], %s250
          %s252 = sand.u32 %s96, 1
          %s253 = smul.addr %s252, 4
          %s254 = scalar_lea.vmem [#allocation5], %s253
          %255 = dma.done %s251, 64
        $region44: #{tpu_custom_call.1} parent=39 // pred_fallthru
          _
      $region40: #{tpu_custom_call.1} parent=5 // pred_fallthru
        _
    $region6: #{tpu_custom_call.1} parent=1 // loop_footer
      %s18 = sadd.s32 1, %s14
    $region7: #{tpu_custom_call.1} parent=1 // loop_footer_branch
      %13 = sbr.rel target = $region3
    $region8: #{tpu_custom_call.1} parent=1 // loop_exit
      _
    %256 = vsyncpa [#allocation3], 1
    %s257 = scalar_lea.sflag [#allocation3], 1
    %258 = vsyncpa %s257, 1
    %259 = vsyncpa [#allocation4], 1
    %s260 = scalar_lea.sflag [#allocation4], 1
    %261 = vsyncpa %s260, 1

</llo_original>
